<compile_context>
chip_gen: v7x
topology: tpu7x:2x2x1
jax: 0.10.0
libtpu: 0.0.40
codegen_flags: <defaults>
</compile_context>

<pallas_src>
import functools

import jax
import jax.numpy as jnp
from jax import lax
from jax.experimental import pallas as pl
from jax.experimental.pallas import tpu as pltpu


def _shift_replicate(r, d):
    """result[:, l] = r[:, clamp(l + d, 0, L-1)]  (replicate-padded lane shift)."""
    if d == 0:
        return r
    rows, L = r.shape
    if d < 0:
        edge = jnp.broadcast_to(r[:, 0:1], (rows, -d))
        return jnp.concatenate([edge, r[:, : L + d]], axis=1)
    edge = jnp.broadcast_to(r[:, L - 1:L], (rows, d))
    return jnp.concatenate([r[:, d:], edge], axis=1)


def _pass_cell_sweep_kernel(x_ref, h0_ref, wgx_ref, wgh_ref, wo_ref, bias_ref,
                            out_ref, h_scr):
    # x_ref:    (1, D, L)          current timestep input (streamed)
    # h0_ref:   (H, L)             initial hidden state (read only at t == 0)
    # wgx_ref:  (K*H + 3H, D)      x-columns of [conv taps (stacked); lin_xh]
    # wgh_ref:  (K*H + 3H, H)      h-columns of the same
    # wo_ref:   (3H, H)            linear columns acting on o1
    # bias_ref: (4H, 1)            [conv bias ; linear bias]
    # out_ref:  (1, 2H, L)         [y ; h_new] for this timestep
    # h_scr:    (H, L)  VMEM       recurrent state carried across grid steps
    H, L = h0_ref.shape
    G = wgx_ref.shape[0]
    K = (G - 3 * H) // H
    pad = K // 2
    t = pl.program_id(0)

    @pl.when(t == 0)
    def _():
        h_scr[...] = h0_ref[...]

    x = x_ref[0]                      # (D, L)
    h = h_scr[...]                    # (H, L)

    # Fused matmul: rows [0, K*H) hold the per-tap conv partials W_t @ [x; h],
    # rows [K*H, G) hold the [x|h]-column part of the linear layer.  Two MXU
    # pushes (x-columns, h-columns), f32 accumulation, no in-kernel concat.
    g = (jnp.dot(wgx_ref[...], x, preferred_element_type=jnp.float32)
         + jnp.dot(wgh_ref[...], h, preferred_element_type=jnp.float32))

    # Conv1d with replicate padding: shift each tap's partial along lanes
    # (on the small result tile, not the MXU input) and accumulate.
    conv_pre = bias_ref[0:H]          # (H, 1), broadcasts over L
    for ti in range(K):
        conv_pre = conv_pre + _shift_replicate(g[ti * H:(ti + 1) * H], ti - pad)
    o1 = jax.nn.sigmoid(conv_pre)     # (H, L)

    # Remaining linear contribution (serial dependency through sigmoid).
    lin = (g[K * H:]
           + jnp.dot(wo_ref[...], o1, preferred_element_type=jnp.float32)
           + bias_ref[H:])            # (3H, L)

    sig = jax.nn.sigmoid(lin)         # single EUP pass over the whole slab
    y = sig[H:2 * H]                  # sublane-aligned slices (H multiple of 8)
    h_new = sig[:H] + y + sig[2 * H:]

    out_ref[0] = jnp.concatenate([y, h_new], axis=0).astype(out_ref.dtype)
    h_scr[...] = h_new                # carry state to the next grid step


def prepare_params(params, input_dim, hidden_dim):
    """One-time weight re-arrangement (hoisted out of the per-step path)."""
    conv_w, conv_b, lin_w, lin_b = params
    D, H = input_dim, hidden_dim
    K = conv_w.shape[2]
    if K % 2 != 1:
        raise ValueError("kernel_size must be odd (replicate-pad conv path)")
    wgx_conv = jnp.concatenate([conv_w[:, :D, t] for t in range(K)], axis=0)
    wgh_conv = jnp.concatenate([conv_w[:, D:, t] for t in range(K)], axis=0)
    w_gx = jnp.concatenate([wgx_conv, lin_w[:, :D]], axis=0).astype(jnp.float32)
    w_gh = jnp.concatenate([wgh_conv, lin_w[:, D + H:]], axis=0).astype(jnp.float32)
    w_o = lin_w[:, D:D + H].astype(jnp.float32)
    bias = jnp.concatenate([conv_b, lin_b], axis=0).reshape(4 * H, 1).astype(jnp.float32)
    return (w_gx, w_gh, w_o, bias)


def conv1d_pass_cell_2_v1_sweep(x_seq, cur_state, prepped):
    """Fused recurrent sweep: x_seq (T, D, L), h0 (H, L) or (1, H, L).

    Returns (y_seq (T, H, L), (c, h_final (H, L))).  Each step applies exactly
    the module's forward; T=1 reproduces a single module call.
    """
    c, h0 = cur_state
    w_gx, w_gh, w_o, bias = prepped
    G, D = w_gx.shape
    H = w_gh.shape[1]
    T, _, L = x_seq.shape
    h0 = h0.reshape(H, L).astype(jnp.float32)
    x_seq = x_seq.astype(jnp.float32)

    const2d = lambda shape: pl.BlockSpec(shape, lambda t: (0, 0))
    out = pl.pallas_call(
        _pass_cell_sweep_kernel,
        out_shape=jax.ShapeDtypeStruct((T, 2 * H, L), jnp.float32),
        grid_spec=pltpu.PrefetchScalarGridSpec(
            num_scalar_prefetch=0,
            grid=(T,),
            in_specs=[
                pl.BlockSpec((1, D, L), lambda t: (t, 0, 0)),   # x_t streamed
                const2d((H, L)),                                # h0 (read at t=0)
                const2d((G, D)),                                # resident weights
                const2d((G, H)),
                const2d((3 * H, H)),
                const2d((4 * H, 1)),
            ],
            out_specs=pl.BlockSpec((1, 2 * H, L), lambda t: (t, 0, 0)),
            scratch_shapes=[pltpu.VMEM((H, L), jnp.float32)],
        ),
        compiler_params=pltpu.CompilerParams(
            dimension_semantics=("arbitrary",)),   # recurrence across steps
    )(x_seq, h0, w_gx, w_gh, w_o, bias)

    y_seq = out[:, :H, :]
    h_final = out[-1, H:, :]
    return y_seq, (c, h_final)


def conv1d_pass_cell_2_v1(x, cur_state, prepped):
    """Single-step module forward: x (1, D, L), h (1, H, L) -> y (1,H,L), (c, h_new (1,H,L))."""
    c, h = cur_state
    y_seq, (c, h_final) = conv1d_pass_cell_2_v1_sweep(x, (c, h), prepped)
    return y_seq[0][None], (c, h_final[None])


def _reference_step(x, h, params):
    """Pure-JAX reference mirroring the PyTorch forward (B=1, L>1 path)."""
    conv_w, conv_b, lin_w, lin_b = params
    H = conv_w.shape[0]
    K = conv_w.shape[2]
    pad = K // 2
    comb1 = jnp.concatenate([x, h], axis=1)                        # (1, D+H, L)
    padded = jnp.pad(comb1, ((0, 0), (0, 0), (pad, pad)), mode="edge")
    conv = lax.conv_general_dilated(
        padded, conv_w, window_strides=(1,), padding="VALID",
        dimension_numbers=("NCH", "OIH", "NCH")) + conv_b[None, :, None]
    o1 = jax.nn.sigmoid(conv)                                      # (1, H, L)
    comb2 = jnp.concatenate([x, o1, h], axis=1)[0].T               # (L, D+2H)
    lin = comb2 @ lin_w.T + lin_b                                  # (L, 3H)
    m = jax.nn.sigmoid(lin[:, :H])
    o = jax.nn.sigmoid(lin[:, H:2 * H])
    h2 = jax.nn.sigmoid(lin[:, 2 * H:])
    h_new = m + o + h2
    return o.T[None], h_new.T[None]                                # (1, H, L)


if __name__ == "__main__":
    key = jax.random.PRNGKey(0)
    D, H, K, L, T = 4, 32, 3, 16, 8   # input_dim, hidden_dim, kernel, section, steps

    k1, k2, k3, k4, k5, k6 = jax.random.split(key, 6)
    x_seq = jax.random.normal(k1, (T, D, L), dtype=jnp.float32)
    # init_hidden() gives zeros; use a random h to exercise the h-weight paths.
    h0 = 0.5 * jax.random.normal(k6, (1, H, L), dtype=jnp.float32)
    c0 = None

    conv_w = 0.1 * jax.random.normal(k2, (H, D + H, K), dtype=jnp.float32)
    conv_b = 0.1 * jax.random.normal(k3, (H,), dtype=jnp.float32)
    lin_w = 0.1 * jax.random.normal(k4, (3 * H, D + 2 * H), dtype=jnp.float32)
    lin_b = 0.1 * jax.random.normal(k5, (3 * H,), dtype=jnp.float32)
    params = (conv_w, conv_b, lin_w, lin_b)

    prepped = prepare_params(params, D, H)   # hoisted: runs once, not per step

    # --- single-step call (exact module forward semantics) ---
    step_fn = jax.jit(functools.partial(conv1d_pass_cell_2_v1, prepped=prepped))
    x0 = x_seq[0][None]                       # (1, D, L)
    y1, (c1, h1) = step_fn(x0, (c0, h0))
    jax.block_until_ready((y1, h1))
    y_ref, h_ref = _reference_step(x0, h0, params)
    assert y1.shape == (1, H, L) and h1.shape == (1, H, L)
    assert jnp.allclose(y1, y_ref, atol=1e-5, rtol=1e-5)
    assert jnp.allclose(h1, h_ref, atol=1e-5, rtol=1e-5)

    # --- fused recurrent sweep: T module forwards in ONE pallas_call ---
    sweep_fn = jax.jit(functools.partial(conv1d_pass_cell_2_v1_sweep, prepped=prepped))
    y_seq, (c_f, h_f) = sweep_fn(x_seq, (c0, h0))
    jax.block_until_ready((y_seq, h_f))

    h_r = h0
    ys = []
    for t in range(T):
        y_t, h_r = _reference_step(x_seq[t][None], h_r, params)
        ys.append(y_t[0])
    y_seq_ref = jnp.stack(ys, axis=0)
    assert y_seq.shape == (T, H, L) and h_f.shape == (H, L)
    assert jnp.allclose(y_seq, y_seq_ref, atol=1e-5, rtol=1e-5)
    assert jnp.allclose(h_f, h_r[0], atol=1e-5, rtol=1e-5)

    print("KERNEL_OK")
</pallas_src>

<mosaic_0001>
module attributes {stable_mosaic.version = 11 : i64} {
  func.func @_pass_cell_sweep_kernel(%arg0: i32, %arg1: memref<1x4x16xf32, #tpu.memory_space<vmem>>, %arg2: memref<32x16xf32, #tpu.memory_space<vmem>>, %arg3: memref<192x4xf32, #tpu.memory_space<vmem>>, %arg4: memref<192x32xf32, #tpu.memory_space<vmem>>, %arg5: memref<96x32xf32, #tpu.memory_space<vmem>>, %arg6: memref<128x1xf32, #tpu.memory_space<vmem>>, %arg7: memref<1x64x16xf32, #tpu.memory_space<vmem>>, %arg8: memref<32x16xf32, #tpu.memory_space<vmem>>) attributes {dimension_semantics = [#tpu.dimension_semantics<arbitrary>], iteration_bounds = array<i64: 1>, scalar_prefetch = 0 : i64, scratch_operands = 1 : i64, tpu.core_type = #tpu.core_type<tc>, window_params = [{transform_indices = @transform_0, window_bounds = array<i64: 1, 4, 16>}, {pipeline_mode = #tpu.pipeline_mode<synchronous>, transform_indices = @transform_1, window_bounds = array<i64: 32, 16>}, {pipeline_mode = #tpu.pipeline_mode<synchronous>, transform_indices = @transform_2, window_bounds = array<i64: 192, 4>}, {pipeline_mode = #tpu.pipeline_mode<synchronous>, transform_indices = @transform_3, window_bounds = array<i64: 192, 32>}, {pipeline_mode = #tpu.pipeline_mode<synchronous>, transform_indices = @transform_4, window_bounds = array<i64: 96, 32>}, {pipeline_mode = #tpu.pipeline_mode<synchronous>, transform_indices = @transform_5, window_bounds = array<i64: 128, 1>}, {transform_indices = @transform_6, window_bounds = array<i64: 1, 64, 16>}]} {
    %c0_i32 = arith.constant 0 : i32
    %0 = arith.cmpi eq, %arg0, %c0_i32 : i32
    %1 = arith.extui %0 : i1 to i32
    %c0_i32_0 = arith.constant 0 : i32
    %2 = arith.cmpi ne, %1, %c0_i32_0 : i32
    scf.if %2 {
      %c0_23 = arith.constant 0 : index
      %c0_24 = arith.constant 0 : index
      %52 = vector.load %arg2[%c0_23, %c0_24] : memref<32x16xf32, #tpu.memory_space<vmem>>, vector<32x16xf32>
      %c0_25 = arith.constant 0 : index
      %c0_26 = arith.constant 0 : index
      %53 = vector.load %arg8[%c0_25, %c0_26] : memref<32x16xf32, #tpu.memory_space<vmem>>, vector<32x16xf32>
      tpu.vector_store %arg8[%c0_25, %c0_26], %52 {strides = array<i32>} : memref<32x16xf32, #tpu.memory_space<vmem>>, vector<32x16xf32>,
    } else {
    }
    %c0 = arith.constant 0 : index
    %c0_1 = arith.constant 0 : index
    %c0_2 = arith.constant 0 : index
    %3 = vector.load %arg1[%c0, %c0_1, %c0_2] : memref<1x4x16xf32, #tpu.memory_space<vmem>>, vector<1x4x16xf32>
    %4 = vector.shape_cast %3 : vector<1x4x16xf32> to vector<4x16xf32>
    %c0_3 = arith.constant 0 : index
    %c0_4 = arith.constant 0 : index
    %5 = vector.load %arg8[%c0_3, %c0_4] : memref<32x16xf32, #tpu.memory_space<vmem>>, vector<32x16xf32>
    %c0_5 = arith.constant 0 : index
    %c0_6 = arith.constant 0 : index
    %6 = vector.load %arg3[%c0_5, %c0_6] : memref<192x4xf32, #tpu.memory_space<vmem>>, vector<192x4xf32>
    %cst = arith.constant dense<0.000000e+00> : vector<192x16xf32>
    %7 = tpu.matmul %6, %4, %cst {dimension_numbers = #tpu.dot_dimension_numbers<[1], [0], [0], [1], [0, 0, 1, 1], [], []>} : vector<192x4xf32>, vector<4x16xf32>, vector<192x16xf32> -> vector<192x16xf32>
    %c0_7 = arith.constant 0 : index
    %c0_8 = arith.constant 0 : index
    %8 = vector.load %arg4[%c0_7, %c0_8] : memref<192x32xf32, #tpu.memory_space<vmem>>, vector<192x32xf32>
    %cst_9 = arith.constant dense<0.000000e+00> : vector<192x16xf32>
    %9 = tpu.matmul %8, %5, %cst_9 {dimension_numbers = #tpu.dot_dimension_numbers<[1], [0], [0], [1], [0, 0, 1, 1], [], []>} : vector<192x32xf32>, vector<32x16xf32>, vector<192x16xf32> -> vector<192x16xf32>
    %10 = arith.addf %7, %9 : vector<192x16xf32>
    %c0_10 = arith.constant 0 : index
    %c0_11 = arith.constant 0 : index
    %11 = vector.load %arg6[%c0_10, %c0_11] : memref<128x1xf32, #tpu.memory_space<vmem>>, vector<32x1xf32>
    %12 = vector.extract_strided_slice %10 {offsets = [0, 0], sizes = [32, 16], strides = [1, 1]} : vector<192x16xf32> to vector<32x16xf32>
    %13 = vector.extract_strided_slice %12 {offsets = [0, 0], sizes = [32, 1], strides = [1, 1]} : vector<32x16xf32> to vector<32x1xf32>
    %14 = vector.extract_strided_slice %12 {offsets = [0, 0], sizes = [32, 15], strides = [1, 1]} : vector<32x16xf32> to vector<32x15xf32>
    %15 = tpu.concatenate %13, %14 in 1 : vector<32x1xf32>, vector<32x15xf32> -> vector<32x16xf32>
    %16 = vector.broadcast %11 : vector<32x1xf32> to vector<32x16xf32>
    %17 = arith.addf %16, %15 : vector<32x16xf32>
    %18 = vector.extract_strided_slice %10 {offsets = [32, 0], sizes = [32, 16], strides = [1, 1]} : vector<192x16xf32> to vector<32x16xf32>
    %19 = arith.addf %17, %18 : vector<32x16xf32>
    %20 = vector.extract_strided_slice %10 {offsets = [64, 0], sizes = [32, 16], strides = [1, 1]} : vector<192x16xf32> to vector<32x16xf32>
    %21 = vector.extract_strided_slice %20 {offsets = [0, 15], sizes = [32, 1], strides = [1, 1]} : vector<32x16xf32> to vector<32x1xf32>
    %22 = vector.extract_strided_slice %20 {offsets = [0, 1], sizes = [32, 15], strides = [1, 1]} : vector<32x16xf32> to vector<32x15xf32>
    %23 = tpu.concatenate %22, %21 in 1 : vector<32x15xf32>, vector<32x1xf32> -> vector<32x16xf32>
    %24 = arith.addf %19, %23 : vector<32x16xf32>
    %25 = arith.negf %24 : vector<32x16xf32>
    %26 = math.exp %25 : vector<32x16xf32>
    %cst_12 = arith.constant 1.000000e+00 : f32
    %27 = vector.broadcast %cst_12 : f32 to vector<32x16xf32>
    %28 = arith.addf %27, %26 : vector<32x16xf32>
    %29 = arith.divf %27, %28 : vector<32x16xf32>
    %30 = vector.extract_strided_slice %10 {offsets = [96, 0], sizes = [96, 16], strides = [1, 1]} : vector<192x16xf32> to vector<96x16xf32>
    %c0_13 = arith.constant 0 : index
    %c0_14 = arith.constant 0 : index
    %31 = vector.load %arg5[%c0_13, %c0_14] : memref<96x32xf32, #tpu.memory_space<vmem>>, vector<96x32xf32>
    %cst_15 = arith.constant dense<0.000000e+00> : vector<96x16xf32>
    %32 = tpu.matmul %31, %29, %cst_15 {dimension_numbers = #tpu.dot_dimension_numbers<[1], [0], [0], [1], [0, 0, 1, 1], [], []>} : vector<96x32xf32>, vector<32x16xf32>, vector<96x16xf32> -> vector<96x16xf32>
    %33 = arith.addf %30, %32 : vector<96x16xf32>
    %c32 = arith.constant 32 : index
    %c0_16 = arith.constant 0 : index
    %34 = vector.load %arg6[%c32, %c0_16] : memref<128x1xf32, #tpu.memory_space<vmem>>, vector<96x1xf32>
    %35 = vector.broadcast %34 : vector<96x1xf32> to vector<96x16xf32>
    %36 = arith.addf %33, %35 : vector<96x16xf32>
    %37 = arith.negf %36 : vector<96x16xf32>
    %38 = math.exp %37 : vector<96x16xf32>
    %cst_17 = arith.constant 1.000000e+00 : f32
    %39 = vector.broadcast %cst_17 : f32 to vector<96x16xf32>
    %40 = arith.addf %39, %38 : vector<96x16xf32>
    %41 = arith.divf %39, %40 : vector<96x16xf32>
    %42 = vector.extract_strided_slice %41 {offsets = [32, 0], sizes = [32, 16], strides = [1, 1]} : vector<96x16xf32> to vector<32x16xf32>
    %43 = vector.extract_strided_slice %41 {offsets = [0, 0], sizes = [32, 16], strides = [1, 1]} : vector<96x16xf32> to vector<32x16xf32>
    %44 = arith.addf %43, %42 : vector<32x16xf32>
    %45 = vector.extract_strided_slice %41 {offsets = [64, 0], sizes = [32, 16], strides = [1, 1]} : vector<96x16xf32> to vector<32x16xf32>
    %46 = arith.addf %44, %45 : vector<32x16xf32>
    %47 = tpu.concatenate %42, %46 in 0 : vector<32x16xf32>, vector<32x16xf32> -> vector<64x16xf32>
    %c0_18 = arith.constant 0 : index
    %c0_19 = arith.constant 0 : index
    %c0_20 = arith.constant 0 : index
    %48 = vector.load %arg7[%c0_18, %c0_19, %c0_20] : memref<1x64x16xf32, #tpu.memory_space<vmem>>, vector<1x64x16xf32>
    %49 = vector.shape_cast %48 : vector<1x64x16xf32> to vector<64x16xf32>
    %50 = vector.shape_cast %47 : vector<64x16xf32> to vector<1x64x16xf32>
    tpu.vector_store %arg7[%c0_18, %c0_19, %c0_20], %50 {strides = array<i32>} : memref<1x64x16xf32, #tpu.memory_space<vmem>>, vector<1x64x16xf32>,
    %c0_21 = arith.constant 0 : index
    %c0_22 = arith.constant 0 : index
    %51 = vector.load %arg8[%c0_21, %c0_22] : memref<32x16xf32, #tpu.memory_space<vmem>>, vector<32x16xf32>
    tpu.vector_store %arg8[%c0_21, %c0_22], %46 {strides = array<i32>} : memref<32x16xf32, #tpu.memory_space<vmem>>, vector<32x16xf32>,
    return
  }
  func.func @transform_0(%arg0: i32) -> (i32, i32, i32) {
    %c0_i32 = arith.constant 0 : i32
    %c0_i32_0 = arith.constant 0 : i32
    %c0_i32_1 = arith.constant 0 : i32
    return %arg0, %c0_i32, %c0_i32_0 : i32, i32, i32
  }
  func.func @transform_1(%arg0: i32) -> (i32, i32) {
    %c0_i32 = arith.constant 0 : i32
    %c0_i32_0 = arith.constant 0 : i32
    %c0_i32_1 = arith.constant 0 : i32
    return %c0_i32, %c0_i32_0 : i32, i32
  }
  func.func @transform_2(%arg0: i32) -> (i32, i32) {
    %c0_i32 = arith.constant 0 : i32
    %c0_i32_0 = arith.constant 0 : i32
    %c0_i32_1 = arith.constant 0 : i32
    return %c0_i32, %c0_i32_0 : i32, i32
  }
  func.func @transform_3(%arg0: i32) -> (i32, i32) {
    %c0_i32 = arith.constant 0 : i32
    %c0_i32_0 = arith.constant 0 : i32
    %c0_i32_1 = arith.constant 0 : i32
    return %c0_i32, %c0_i32_0 : i32, i32
  }
  func.func @transform_4(%arg0: i32) -> (i32, i32) {
    %c0_i32 = arith.constant 0 : i32
    %c0_i32_0 = arith.constant 0 : i32
    %c0_i32_1 = arith.constant 0 : i32
    return %c0_i32, %c0_i32_0 : i32, i32
  }
  func.func @transform_5(%arg0: i32) -> (i32, i32) {
    %c0_i32 = arith.constant 0 : i32
    %c0_i32_0 = arith.constant 0 : i32
    %c0_i32_1 = arith.constant 0 : i32
    return %c0_i32, %c0_i32_0 : i32, i32
  }
  func.func @transform_6(%arg0: i32) -> (i32, i32, i32) {
    %c0_i32 = arith.constant 0 : i32
    %c0_i32_0 = arith.constant 0 : i32
    %c0_i32_1 = arith.constant 0 : i32
    return %arg0, %c0_i32, %c0_i32_0 : i32, i32, i32
  }
}

</mosaic_0001>

<llo_original>
// kernel: conv1d_pass_cell_2_v1.1
$region0: #{conv1d_pass_cell_2_v1.1}
  #allocation0 [shape = 'u32[]', space=smem, size = 0x4, offset = 0x4, fixed_abs, tag = 'smem constant byte address 0x4 - core index']
  #allocation1 [shape = 'u32[144,128]{1,0:T(1,128)}', space=vmem, size = 0x12000, scoped, tag = 'internal scratch']
  #allocation2 [shape = 'f32[32,16]{1,0:T(8,128)}', space=vmem, size = 0x4000, scoped, tag = 'scratch operand']
  %s0 = inlined_call_operand.vmem [shape: f32[1,4,16], index: 0, kind: input, shape index: {}]
  %s1 = inlined_call_operand.vmem [shape: f32[32,16], index: 1, kind: input, shape index: {}]
  %s2 = inlined_call_operand.hbm [shape: f32[192,4], index: 2, kind: input, shape index: {}]
  %s3 = inlined_call_operand.hbm [shape: f32[192,32], index: 3, kind: input, shape index: {}]
  %s4 = inlined_call_operand.hbm [shape: f32[96,32], index: 4, kind: input, shape index: {}]
  %s5 = inlined_call_operand.hbm [shape: f32[128,1], index: 5, kind: input, shape index: {}]
  %s6 = inlined_call_operand.vmem [shape: f32[1,64,16], index: 6, kind: output, shape index: {}]
  %s7 = sld [smem:[#allocation0]]
  $region54: #{conv1d_pass_cell_2_v1.1} parent=0
    _
  %s9 = ssub.s32 1, %s7
  %s10 = scalar_select 0, %s9, %s7
  $region1: #{conv1d_pass_cell_2_v1.1} parent=0
    #allocation3 [shape = 'u8[98304]{0}', space=vmem, size = 0x18000, scoped, tag = 'input window, operand 2, single buffered']
    #allocation4 [shape = 's32[1]{0}', space=sflag, size = 0x4, scoped, tag = 'scoped memory for conv1d_pass_cell_2_v1.1']
    #allocation5 [shape = 'u8[98304]{0}', space=vmem, size = 0x18000, scoped, tag = 'input window, operand 3, single buffered']
    #allocation6 [shape = 's32[1]{0}', space=sflag, size = 0x4, scoped, tag = 'scoped memory for conv1d_pass_cell_2_v1.1']
    #allocation7 [shape = 'u8[49152]{0}', space=vmem, size = 0xc000, scoped, tag = 'input window, operand 4, single buffered']
    #allocation8 [shape = 'u8[65536]{0}', space=vmem, size = 0x10000, scoped, tag = 'input window, operand 5, single buffered']
    #allocation9 [shape = 's32[1]{0}', space=sflag, size = 0x4, scoped, tag = 'scoped memory for conv1d_pass_cell_2_v1.1']
    %11 = vsyncpa [#allocation4], 0
    %12 = vsyncpa [#allocation6], 0
    %13 = vsyncpa [#allocation9], 0
    // Predicated region
    $region2: #{conv1d_pass_cell_2_v1.1} parent=1 // pred_check
      _
    $region3: #{conv1d_pass_cell_2_v1.1} parent=1 // pred_check_branch
      %15 = sbr.rel (0) target = $region5
    $region4: #{conv1d_pass_cell_2_v1.1} parent=1 // pred_region
      _
    $region5: #{conv1d_pass_cell_2_v1.1} parent=1 // pred_fallthru
      _
    // Predicated region
    $region6: #{conv1d_pass_cell_2_v1.1} parent=1 // pred_check
      _
    $region7: #{conv1d_pass_cell_2_v1.1} parent=1 // pred_check_branch
      %17 = sbr.rel (0) target = $region9
    $region8: #{conv1d_pass_cell_2_v1.1} parent=1 // pred_region
      _
    $region9: #{conv1d_pass_cell_2_v1.1} parent=1 // pred_fallthru
      _
    // Predicated region
    $region10: #{conv1d_pass_cell_2_v1.1} parent=1 // pred_check
      _
    $region11: #{conv1d_pass_cell_2_v1.1} parent=1 // pred_check_branch
      %19 = sbr.rel (0) target = $region13
    $region12: #{conv1d_pass_cell_2_v1.1} parent=1 // pred_region
      %s21 = ssub.s32 3072, 3072
      %22 = vsyncadd [#allocation4], %s21
      %s23 = sshll.u32 [#allocation3], 4
      %s24 = int_to_ptr.vmem [resolvable:$true] %s23
      %29 = dma.hbm_to_vmem [thread:$0]  %s2, 3072, %s24, [#allocation4], 128, 128, 8
    $region13: #{conv1d_pass_cell_2_v1.1} parent=1 // pred_fallthru
      _
    // Predicated region
    $region14: #{conv1d_pass_cell_2_v1.1} parent=1 // pred_check
      _
    $region15: #{conv1d_pass_cell_2_v1.1} parent=1 // pred_check_branch
      %31 = sbr.rel (0) target = $region17
    $region16: #{conv1d_pass_cell_2_v1.1} parent=1 // pred_region
      %s33 = ssub.s32 3072, 3072
      %34 = vsyncadd [#allocation6], %s33
      %s35 = sshll.u32 [#allocation5], 4
      %s36 = int_to_ptr.vmem [resolvable:$true] %s35
      %41 = dma.hbm_to_vmem [thread:$0]  %s3, 3072, %s36, [#allocation6], 128, 128, 8
    $region17: #{conv1d_pass_cell_2_v1.1} parent=1 // pred_fallthru
      _
    // Predicated region
    $region18: #{conv1d_pass_cell_2_v1.1} parent=1 // pred_check
      _
    $region19: #{conv1d_pass_cell_2_v1.1} parent=1 // pred_check_branch
      %43 = sbr.rel (0) target = $region21
    $region20: #{conv1d_pass_cell_2_v1.1} parent=1 // pred_region
      %s45 = ssub.s32 1536, 1536
      %46 = vsyncadd [#allocation6], %s45
      %s47 = sshll.u32 [#allocation7], 4
      %s48 = int_to_ptr.vmem [resolvable:$true] %s47
      %53 = dma.hbm_to_vmem [thread:$0]  %s4, 1536, %s48, [#allocation6], 128, 128, 8
    $region21: #{conv1d_pass_cell_2_v1.1} parent=1 // pred_fallthru
      _
    // Predicated region
    $region22: #{conv1d_pass_cell_2_v1.1} parent=1 // pred_check
      _
    $region23: #{conv1d_pass_cell_2_v1.1} parent=1 // pred_check_branch
      %55 = sbr.rel (0) target = $region25
    $region24: #{conv1d_pass_cell_2_v1.1} parent=1 // pred_region
      %s57 = ssub.s32 2048, 2048
      %58 = vsyncadd [#allocation9], %s57
      %s59 = sshll.u32 [#allocation8], 4
      %s60 = int_to_ptr.vmem [resolvable:$true] %s59
      %65 = dma.hbm_to_vmem [thread:$0]  %s5, 2048, %s60, [#allocation9], 128, 128, 8
    $region25: #{conv1d_pass_cell_2_v1.1} parent=1 // pred_fallthru
      _
    // Predicated region
    $region26: #{conv1d_pass_cell_2_v1.1} parent=1 // pred_check
      _
    $region27: #{conv1d_pass_cell_2_v1.1} parent=1 // pred_check_branch
      %67 = sbr.rel (0) target = $region29
    $region28: #{conv1d_pass_cell_2_v1.1} parent=1 // pred_region
      %68 = dma.done [#allocation4], 3072
    $region29: #{conv1d_pass_cell_2_v1.1} parent=1 // pred_fallthru
      _
    // Predicated region
    $region30: #{conv1d_pass_cell_2_v1.1} parent=1 // pred_check
      _
    $region31: #{conv1d_pass_cell_2_v1.1} parent=1 // pred_check_branch
      %70 = sbr.rel (0) target = $region33
    $region32: #{conv1d_pass_cell_2_v1.1} parent=1 // pred_region
      %71 = dma.done [#allocation6], 3072
    $region33: #{conv1d_pass_cell_2_v1.1} parent=1 // pred_fallthru
      _
    // Predicated region
    $region34: #{conv1d_pass_cell_2_v1.1} parent=1 // pred_check
      _
    $region35: #{conv1d_pass_cell_2_v1.1} parent=1 // pred_check_branch
      %73 = sbr.rel (0) target = $region37
    $region36: #{conv1d_pass_cell_2_v1.1} parent=1 // pred_region
      %74 = dma.done [#allocation6], 1536
    $region37: #{conv1d_pass_cell_2_v1.1} parent=1 // pred_fallthru
      _
    // Predicated region
    $region38: #{conv1d_pass_cell_2_v1.1} parent=1 // pred_check
      _
    $region39: #{conv1d_pass_cell_2_v1.1} parent=1 // pred_check_branch
      %76 = sbr.rel (0) target = $region41
    $region40: #{conv1d_pass_cell_2_v1.1} parent=1 // pred_region
      %77 = dma.done [#allocation9], 2048
    $region41: #{conv1d_pass_cell_2_v1.1} parent=1 // pred_fallthru
      _
    %p78 = scmp.eq.s32.totalorder 0, 0
    // Predicated region
    $region42: #{conv1d_pass_cell_2_v1.1} parent=1 // pred_check
      %p79 = pneg %p78
    $region43: #{conv1d_pass_cell_2_v1.1} parent=1 // pred_check_branch
      %81 = sbr.rel (%p79) target = $region45
    $region44: #{conv1d_pass_cell_2_v1.1} parent=1 // pred_region
      %v82 = vld [vmem:[%s1] sm:$0xff]
      %v83 = vld [vmem:[%s1 + $0x8] sm:$0xff]
      %v84 = vld [vmem:[%s1 + $0x10] sm:$0xff]
      %v85 = vld [vmem:[%s1 + $0x18] sm:$0xff]
      %vm86 = vcmask 130048
      %87 = vst.msk [vmem:[#allocation2] sm:$0xff] %vm86, %v82
      %88 = vst.msk [vmem:[#allocation2 + $0x8] sm:$0xff] %vm86, %v83
      %89 = vst.msk [vmem:[#allocation2 + $0x10] sm:$0xff] %vm86, %v84
      %90 = vst.msk [vmem:[#allocation2 + $0x18] sm:$0xff] %vm86, %v85
    $region45: #{conv1d_pass_cell_2_v1.1} parent=1 // pred_fallthru
      _
    %v91 = vld [vmem:[%s0] sm:$0xf]
    %v92 = vld [vmem:[#allocation2] sm:$0xff]
    %v93 = vld [vmem:[#allocation2 + $0x8] sm:$0xff]
    %v94 = vld [vmem:[#allocation2 + $0x10] sm:$0xff]
    %v95 = vld [vmem:[#allocation2 + $0x18] sm:$0xff]
    %v96 = vld [vmem:[#allocation3] sm:$0xff]
    %v97 = vld [vmem:[#allocation3 + $0x8] sm:$0xff]
    %v98 = vld [vmem:[#allocation3 + $0x10] sm:$0xff]
    %v99 = vld [vmem:[#allocation3 + $0x18] sm:$0xff]
    %v100 = vld [vmem:[#allocation3 + $0x20] sm:$0xff]
    %v101 = vld [vmem:[#allocation3 + $0x28] sm:$0xff]
    %v102 = vld [vmem:[#allocation3 + $0x30] sm:$0xff]
    %v103 = vld [vmem:[#allocation3 + $0x38] sm:$0xff]
    %v104 = vld [vmem:[#allocation3 + $0x40] sm:$0xff]
    %v105 = vld [vmem:[#allocation3 + $0x48] sm:$0xff]
    %v106 = vld [vmem:[#allocation3 + $0x50] sm:$0xff]
    %v107 = vld [vmem:[#allocation3 + $0x58] sm:$0xff]
    %v108 = vld [vmem:[#allocation3 + $0x60] sm:$0xff]
    %v109 = vld [vmem:[#allocation3 + $0x68] sm:$0xff]
    %v110 = vld [vmem:[#allocation3 + $0x70] sm:$0xff]
    %v111 = vld [vmem:[#allocation3 + $0x78] sm:$0xff]
    %v112 = vld [vmem:[#allocation3 + $0x80] sm:$0xff]
    %v113 = vld [vmem:[#allocation3 + $0x88] sm:$0xff]
    %v114 = vld [vmem:[#allocation3 + $0x90] sm:$0xff]
    %v115 = vld [vmem:[#allocation3 + $0x98] sm:$0xff]
    %v116 = vld [vmem:[#allocation3 + $0xa0] sm:$0xff]
    %v117 = vld [vmem:[#allocation3 + $0xa8] sm:$0xff]
    %v118 = vld [vmem:[#allocation3 + $0xb0] sm:$0xff]
    %v119 = vld [vmem:[#allocation3 + $0xb8] sm:$0xff]
    %v120 = vld [vmem:[#allocation5] sm:$0xff]
    %v121 = vld [vmem:[#allocation5 + $0x8] sm:$0xff]
    %v122 = vld [vmem:[#allocation5 + $0x10] sm:$0xff]
    %v123 = vld [vmem:[#allocation5 + $0x18] sm:$0xff]
    %v124 = vld [vmem:[#allocation5 + $0x20] sm:$0xff]
    %v125 = vld [vmem:[#allocation5 + $0x28] sm:$0xff]
    %v126 = vld [vmem:[#allocation5 + $0x30] sm:$0xff]
    %v127 = vld [vmem:[#allocation5 + $0x38] sm:$0xff]
    %v128 = vld [vmem:[#allocation5 + $0x40] sm:$0xff]
    %v129 = vld [vmem:[#allocation5 + $0x48] sm:$0xff]
    %v130 = vld [vmem:[#allocation5 + $0x50] sm:$0xff]
    %v131 = vld [vmem:[#allocation5 + $0x58] sm:$0xff]
    %v132 = vld [vmem:[#allocation5 + $0x60] sm:$0xff]
    %v133 = vld [vmem:[#allocation5 + $0x68] sm:$0xff]
    %v134 = vld [vmem:[#allocation5 + $0x70] sm:$0xff]
    %v135 = vld [vmem:[#allocation5 + $0x78] sm:$0xff]
    %v136 = vld [vmem:[#allocation5 + $0x80] sm:$0xff]
    %v137 = vld [vmem:[#allocation5 + $0x88] sm:$0xff]
    %v138 = vld [vmem:[#allocation5 + $0x90] sm:$0xff]
    %v139 = vld [vmem:[#allocation5 + $0x98] sm:$0xff]
    %v140 = vld [vmem:[#allocation5 + $0xa0] sm:$0xff]
    %v141 = vld [vmem:[#allocation5 + $0xa8] sm:$0xff]
    %v142 = vld [vmem:[#allocation5 + $0xb0] sm:$0xff]
    %v143 = vld [vmem:[#allocation5 + $0xb8] sm:$0xff]
    %vm144 = vcmask 261120
    %v146 = vsel %vm144, %v120, 0
    %v149 = vsel %vm144, %v121, 0
    %v152 = vsel %vm144, %v122, 0
    %v155 = vsel %vm144, %v123, 0
    %v158 = vsel %vm144, %v124, 0
    %v161 = vsel %vm144, %v125, 0
    %v164 = vsel %vm144, %v126, 0
    %v167 = vsel %vm144, %v127, 0
    %v170 = vsel %vm144, %v128, 0
    %v173 = vsel %vm144, %v129, 0
    %v176 = vsel %vm144, %v130, 0
    %v179 = vsel %vm144, %v131, 0
    %v182 = vsel %vm144, %v132, 0
    %v185 = vsel %vm144, %v133, 0
    %v188 = vsel %vm144, %v134, 0
    %v191 = vsel %vm144, %v135, 0
    %v194 = vsel %vm144, %v136, 0
    %v197 = vsel %vm144, %v137, 0
    %v200 = vsel %vm144, %v138, 0
    %v203 = vsel %vm144, %v139, 0
    %v206 = vsel %vm144, %v140, 0
    %v209 = vsel %vm144, %v141, 0
    %v212 = vsel %vm144, %v142, 0
    %v215 = vsel %vm144, %v143, 0
    %217 = vmatprep.subr.mxu0 0.0
    %218 = vmatpush1.msra.mxu0 %v92
    %219 = vmatprep.subr.mxu0 0.0
    %220 = vmatpush1.msra.mxu0 %v93
    %221 = vmatprep.subr.mxu0 0.0
    %222 = vmatpush1.msra.mxu0 %v94
    %223 = vmatprep.subr.mxu0 0.0
    %224 = vmatpush1.msra.mxu0 %v95
    %225 = vmatprep.subr.mxu0 0.0
    %226 = vmatpush1.msra.mxu0 0.0
    %227 = vmatprep.subr.mxu0 0.0
    %228 = vmatpush1.msra.mxu0 0.0
    %229 = vmatprep.subr.mxu0 0.0
    %230 = vmatpush1.msra.mxu0 0.0
    %231 = vmatprep.subr.mxu0 0.0
    %232 = vmatpush1.msra.mxu0 0.0
    %233 = vmatprep.subr.mxu0 0.0
    %234 = vmatpush1.msra.mxu0 0.0
    %235 = vmatprep.subr.mxu0 0.0
    %236 = vmatpush1.msra.mxu0 0.0
    %237 = vmatprep.subr.mxu0 0.0
    %238 = vmatpush1.msra.mxu0 0.0
    %239 = vmatprep.subr.mxu0 0.0
    %240 = vmatpush1.msra.mxu0 0.0
    %241 = vmatprep.subr.mxu0 0.0
    %242 = vmatpush1.msra.mxu0 0.0
    %243 = vmatprep.subr.mxu0 0.0
    %244 = vmatpush1.msra.mxu0 0.0
    %245 = vmatprep.subr.mxu0 0.0
    %246 = vmatpush1.msra.mxu0 0.0
    %247 = vmatprep.subr.mxu0 0.0
    %248 = vmatpush1.msra.mxu0 0.0
    %249 = vmatprep.subr.mxu0 0.0
    %250 = vmatpush1.msra.mxu0 0.0
    %251 = vmatprep.subr.mxu0 0.0
    %252 = vmatpush1.msra.mxu0 0.0
    %253 = vmatprep.subr.mxu0 0.0
    %254 = vmatpush1.msra.mxu0 0.0
    %255 = vmatprep.subr.mxu0 0.0
    %256 = vmatpush1.msra.mxu0 0.0
    %257 = vmatprep.subr.mxu0 0.0
    %258 = vmatpush1.msra.mxu0 0.0
    %259 = vmatprep.subr.mxu0 0.0
    %260 = vmatpush1.msra.mxu0 0.0
    %261 = vmatprep.subr.mxu0 0.0
    %262 = vmatpush1.msra.mxu0 0.0
    %263 = vmatprep.subr.mxu0 0.0
    %264 = vmatpush1.msra.mxu0 0.0
    %265 = vmatprep.subr.mxu0 0.0
    %266 = vmatpush1.msra.mxu0 0.0
    %267 = vmatprep.subr.mxu0 0.0
    %268 = vmatpush1.msra.mxu0 0.0
    %269 = vmatprep.subr.mxu0 0.0
    %270 = vmatpush1.msra.mxu0 0.0
    %271 = vmatprep.subr.mxu0 0.0
    %272 = vmatpush1.msra.mxu0 0.0
    %273 = vmatprep.subr.mxu0 0.0
    %274 = vmatpush1.msra.mxu0 0.0
    %275 = vmatprep.subr.mxu0 0.0
    %276 = vmatpush1.msra.mxu0 0.0
    %277 = vmatprep.subr.mxu0 0.0
    %278 = vmatpush1.msra.mxu0 0.0
    %279 = vmatprep.subr.mxu0 0.0
    %280 = vmatpush1.msra.mxu0 0.0
    %281 = vmatprep.mubr.f32.mxu0 0.0
    %282 = vmatmul.mubr.f32.gmra.mrb[0].mxu0 %v146
    %v283 = vpop.f32.mrb[0].mxu0
    %v284 = vadd.f32 0.0, %v283
    %v285 = vpop.f32.mrb[0].mxu0
    %286 = vmatprep.mubr.f32.mxu0 0.0
    %287 = vmatmul.mubr.f32.gmra.mrb[0].mxu0 %v149
    %v288 = vpop.f32.mrb[0].mxu0
    %v289 = vadd.f32 0.0, %v288
    %v290 = vpop.f32.mrb[0].mxu0
    %291 = vmatprep.mubr.f32.mxu0 0.0
    %292 = vmatmul.mubr.f32.gmra.mrb[0].mxu0 %v152
    %v293 = vpop.f32.mrb[0].mxu0
    %v294 = vadd.f32 0.0, %v293
    %v295 = vpop.f32.mrb[0].mxu0
    %296 = vmatprep.mubr.f32.mxu0 0.0
    %297 = vmatmul.mubr.f32.gmra.mrb[0].mxu0 %v155
    %v298 = vpop.f32.mrb[0].mxu0
    %v299 = vadd.f32 0.0, %v298
    %v300 = vpop.f32.mrb[0].mxu0
    %301 = vmatprep.mubr.f32.mxu0 0.0
    %302 = vmatmul.mubr.f32.gmra.mrb[0].mxu0 %v158
    %v303 = vpop.f32.mrb[0].mxu0
    %v304 = vadd.f32 0.0, %v303
    %v305 = vpop.f32.mrb[0].mxu0
    %306 = vmatprep.mubr.f32.mxu0 0.0
    %307 = vmatmul.mubr.f32.gmra.mrb[0].mxu0 %v161
    %v308 = vpop.f32.mrb[0].mxu0
    %v309 = vadd.f32 0.0, %v308
    %v310 = vpop.f32.mrb[0].mxu0
    %311 = vmatprep.mubr.f32.mxu0 0.0
    %312 = vmatmul.mubr.f32.gmra.mrb[0].mxu0 %v164
    %v313 = vpop.f32.mrb[0].mxu0
    %v314 = vadd.f32 0.0, %v313
    %v315 = vpop.f32.mrb[0].mxu0
    %316 = vmatprep.mubr.f32.mxu0 0.0
    %317 = vmatmul.mubr.f32.gmra.mrb[0].mxu0 %v167
    %v318 = vpop.f32.mrb[0].mxu0
    %v319 = vadd.f32 0.0, %v318
    %v320 = vpop.f32.mrb[0].mxu0
    %321 = vmatprep.mubr.f32.mxu0 0.0
    %322 = vmatmul.mubr.f32.gmra.mrb[0].mxu0 %v170
    %v323 = vpop.f32.mrb[0].mxu0
    %v324 = vadd.f32 0.0, %v323
    %v325 = vpop.f32.mrb[0].mxu0
    %326 = vmatprep.mubr.f32.mxu0 0.0
    %327 = vmatmul.mubr.f32.gmra.mrb[0].mxu0 %v173
    %v328 = vpop.f32.mrb[0].mxu0
    %v329 = vadd.f32 0.0, %v328
    %v330 = vpop.f32.mrb[0].mxu0
    %331 = vmatprep.mubr.f32.mxu0 0.0
    %332 = vmatmul.mubr.f32.gmra.mrb[0].mxu0 %v176
    %v333 = vpop.f32.mrb[0].mxu0
    %v334 = vadd.f32 0.0, %v333
    %v335 = vpop.f32.mrb[0].mxu0
    %336 = vmatprep.mubr.f32.mxu0 0.0
    %337 = vmatmul.mubr.f32.gmra.mrb[0].mxu0 %v179
    %v338 = vpop.f32.mrb[0].mxu0
    %v339 = vadd.f32 0.0, %v338
    %v340 = vpop.f32.mrb[0].mxu0
    %341 = vmatprep.mubr.f32.mxu0 0.0
    %342 = vmatmul.mubr.f32.gmra.mrb[0].mxu0 %v182
    %v343 = vpop.f32.mrb[0].mxu0
    %v344 = vadd.f32 0.0, %v343
    %v345 = vpop.f32.mrb[0].mxu0
    %346 = vmatprep.mubr.f32.mxu0 0.0
    %347 = vmatmul.mubr.f32.gmra.mrb[0].mxu0 %v185
    %v348 = vpop.f32.mrb[0].mxu0
    %v349 = vadd.f32 0.0, %v348
    %v350 = vpop.f32.mrb[0].mxu0
    %351 = vmatprep.mubr.f32.mxu0 0.0
    %352 = vmatmul.mubr.f32.gmra.mrb[0].mxu0 %v188
    %v353 = vpop.f32.mrb[0].mxu0
    %v354 = vadd.f32 0.0, %v353
    %v355 = vpop.f32.mrb[0].mxu0
    %356 = vmatprep.mubr.f32.mxu0 0.0
    %357 = vmatmul.mubr.f32.gmra.mrb[0].mxu0 %v191
    %v358 = vpop.f32.mrb[0].mxu0
    %v359 = vadd.f32 0.0, %v358
    %v360 = vpop.f32.mrb[0].mxu0
    %361 = vmatprep.mubr.f32.mxu0 0.0
    %362 = vmatmul.mubr.f32.gmra.mrb[0].mxu0 %v194
    %v363 = vpop.f32.mrb[0].mxu0
    %v364 = vadd.f32 0.0, %v363
    %v365 = vpop.f32.mrb[0].mxu0
    %366 = vmatprep.mubr.f32.mxu0 0.0
    %367 = vmatmul.mubr.f32.gmra.mrb[0].mxu0 %v197
    %v368 = vpop.f32.mrb[0].mxu0
    %v369 = vadd.f32 0.0, %v368
    %v370 = vpop.f32.mrb[0].mxu0
    %371 = vmatprep.mubr.f32.mxu0 0.0
    %372 = vmatmul.mubr.f32.gmra.mrb[0].mxu0 %v200
    %v373 = vpop.f32.mrb[0].mxu0
    %v374 = vadd.f32 0.0, %v373
    %v375 = vpop.f32.mrb[0].mxu0
    %376 = vmatprep.mubr.f32.mxu0 0.0
    %377 = vmatmul.mubr.f32.gmra.mrb[0].mxu0 %v203
    %v378 = vpop.f32.mrb[0].mxu0
    %v379 = vadd.f32 0.0, %v378
    %v380 = vpop.f32.mrb[0].mxu0
    %381 = vmatprep.mubr.f32.mxu0 0.0
    %382 = vmatmul.mubr.f32.gmra.mrb[0].mxu0 %v206
    %v383 = vpop.f32.mrb[0].mxu0
    %v384 = vadd.f32 0.0, %v383
    %v385 = vpop.f32.mrb[0].mxu0
    %386 = vmatprep.mubr.f32.mxu0 0.0
    %387 = vmatmul.mubr.f32.gmra.mrb[0].mxu0 %v209
    %v388 = vpop.f32.mrb[0].mxu0
    %v389 = vadd.f32 0.0, %v388
    %v390 = vpop.f32.mrb[0].mxu0
    %391 = vmatprep.mubr.f32.mxu0 0.0
    %392 = vmatmul.mubr.f32.gmra.mrb[0].mxu0 %v212
    %v393 = vpop.f32.mrb[0].mxu0
    %v394 = vadd.f32 0.0, %v393
    %v395 = vpop.f32.mrb[0].mxu0
    %396 = vmatprep.mubr.f32.mxu0 0.0
    %397 = vmatmul.mubr.f32.gmra.mrb[0].mxu0 %v215
    %v398 = vpop.f32.mrb[0].mxu0
    %v399 = vadd.f32 0.0, %v398
    %v400 = vpop.f32.mrb[0].mxu0
    %401 = vdwg.mxu0
    %vm402 = vcmask 31744
    %v404 = vsel %vm402, %v96, 0
    %v407 = vsel %vm402, %v97, 0
    %v410 = vsel %vm402, %v98, 0
    %v413 = vsel %vm402, %v99, 0
    %v416 = vsel %vm402, %v100, 0
    %v419 = vsel %vm402, %v101, 0
    %v422 = vsel %vm402, %v102, 0
    %v425 = vsel %vm402, %v103, 0
    %v428 = vsel %vm402, %v104, 0
    %v431 = vsel %vm402, %v105, 0
    %v434 = vsel %vm402, %v106, 0
    %v437 = vsel %vm402, %v107, 0
    %v440 = vsel %vm402, %v108, 0
    %v443 = vsel %vm402, %v109, 0
    %v446 = vsel %vm402, %v110, 0
    %v449 = vsel %vm402, %v111, 0
    %v452 = vsel %vm402, %v112, 0
    %v455 = vsel %vm402, %v113, 0
    %v458 = vsel %vm402, %v114, 0
    %v461 = vsel %vm402, %v115, 0
    %v464 = vsel %vm402, %v116, 0
    %v467 = vsel %vm402, %v117, 0
    %v470 = vsel %vm402, %v118, 0
    %v473 = vsel %vm402, %v119, 0
    %vm475 = vcmask 1043456
    %v477 = vsel %vm475, %v91, 0
    %479 = vmatprep.subr.mxu0 0.0
    %480 = vmatpush1.msra.mxu0 %v477
    %481 = vmatprep.subr.mxu0 0.0
    %482 = vmatpush1.msra.mxu0 0.0
    %483 = vmatprep.subr.mxu0 0.0
    %484 = vmatpush1.msra.mxu0 0.0
    %485 = vmatprep.subr.mxu0 0.0
    %486 = vmatpush1.msra.mxu0 0.0
    %487 = vmatprep.subr.mxu0 0.0
    %488 = vmatpush1.msra.mxu0 0.0
    %489 = vmatprep.subr.mxu0 0.0
    %490 = vmatpush1.msra.mxu0 0.0
    %491 = vmatprep.subr.mxu0 0.0
    %492 = vmatpush1.msra.mxu0 0.0
    %493 = vmatprep.subr.mxu0 0.0
    %494 = vmatpush1.msra.mxu0 0.0
    %495 = vmatprep.subr.mxu0 0.0
    %496 = vmatpush1.msra.mxu0 0.0
    %497 = vmatprep.subr.mxu0 0.0
    %498 = vmatpush1.msra.mxu0 0.0
    %499 = vmatprep.subr.mxu0 0.0
    %500 = vmatpush1.msra.mxu0 0.0
    %501 = vmatprep.subr.mxu0 0.0
    %502 = vmatpush1.msra.mxu0 0.0
    %503 = vmatprep.subr.mxu0 0.0
    %504 = vmatpush1.msra.mxu0 0.0
    %505 = vmatprep.subr.mxu0 0.0
    %506 = vmatpush1.msra.mxu0 0.0
    %507 = vmatprep.subr.mxu0 0.0
    %508 = vmatpush1.msra.mxu0 0.0
    %509 = vmatprep.subr.mxu0 0.0
    %510 = vmatpush1.msra.mxu0 0.0
    %511 = vmatprep.subr.mxu0 0.0
    %512 = vmatpush1.msra.mxu0 0.0
    %513 = vmatprep.subr.mxu0 0.0
    %514 = vmatpush1.msra.mxu0 0.0
    %515 = vmatprep.subr.mxu0 0.0
    %516 = vmatpush1.msra.mxu0 0.0
    %517 = vmatprep.subr.mxu0 0.0
    %518 = vmatpush1.msra.mxu0 0.0
    %519 = vmatprep.subr.mxu0 0.0
    %520 = vmatpush1.msra.mxu0 0.0
    %521 = vmatprep.subr.mxu0 0.0
    %522 = vmatpush1.msra.mxu0 0.0
    %523 = vmatprep.subr.mxu0 0.0
    %524 = vmatpush1.msra.mxu0 0.0
    %525 = vmatprep.subr.mxu0 0.0
    %526 = vmatpush1.msra.mxu0 0.0
    %527 = vmatprep.subr.mxu0 0.0
    %528 = vmatpush1.msra.mxu0 0.0
    %529 = vmatprep.subr.mxu0 0.0
    %530 = vmatpush1.msra.mxu0 0.0
    %531 = vmatprep.subr.mxu0 0.0
    %532 = vmatpush1.msra.mxu0 0.0
    %533 = vmatprep.subr.mxu0 0.0
    %534 = vmatpush1.msra.mxu0 0.0
    %535 = vmatprep.subr.mxu0 0.0
    %536 = vmatpush1.msra.mxu0 0.0
    %537 = vmatprep.subr.mxu0 0.0
    %538 = vmatpush1.msra.mxu0 0.0
    %539 = vmatprep.subr.mxu0 0.0
    %540 = vmatpush1.msra.mxu0 0.0
    %541 = vmatprep.subr.mxu0 0.0
    %542 = vmatpush1.msra.mxu0 0.0
    %543 = vmatprep.mubr.f32.mxu0 0.0
    %544 = vmatmul.mubr.f32.gmra.mrb[0].mxu0 %v404
    %v545 = vpop.f32.mrb[0].mxu0
    %v546 = vadd.f32 %v284, %v545
    %v547 = vpop.f32.mrb[0].mxu0
    %548 = vmatprep.mubr.f32.mxu0 0.0
    %549 = vmatmul.mubr.f32.gmra.mrb[0].mxu0 %v407
    %v550 = vpop.f32.mrb[0].mxu0
    %v551 = vadd.f32 %v289, %v550
    %v552 = vpop.f32.mrb[0].mxu0
    %553 = vmatprep.mubr.f32.mxu0 0.0
    %554 = vmatmul.mubr.f32.gmra.mrb[0].mxu0 %v410
    %v555 = vpop.f32.mrb[0].mxu0
    %v556 = vadd.f32 %v294, %v555
    %v557 = vpop.f32.mrb[0].mxu0
    %558 = vmatprep.mubr.f32.mxu0 0.0
    %559 = vmatmul.mubr.f32.gmra.mrb[0].mxu0 %v413
    %v560 = vpop.f32.mrb[0].mxu0
    %v561 = vadd.f32 %v299, %v560
    %v562 = vpop.f32.mrb[0].mxu0
    %563 = vmatprep.mubr.f32.mxu0 0.0
    %564 = vmatmul.mubr.f32.gmra.mrb[0].mxu0 %v416
    %v565 = vpop.f32.mrb[0].mxu0
    %v566 = vadd.f32 %v304, %v565
    %v567 = vpop.f32.mrb[0].mxu0
    %568 = vmatprep.mubr.f32.mxu0 0.0
    %569 = vmatmul.mubr.f32.gmra.mrb[0].mxu0 %v419
    %v570 = vpop.f32.mrb[0].mxu0
    %v571 = vadd.f32 %v309, %v570
    %v572 = vpop.f32.mrb[0].mxu0
    %573 = vmatprep.mubr.f32.mxu0 0.0
    %574 = vmatmul.mubr.f32.gmra.mrb[0].mxu0 %v422
    %v575 = vpop.f32.mrb[0].mxu0
    %v576 = vadd.f32 %v314, %v575
    %v577 = vpop.f32.mrb[0].mxu0
    %578 = vmatprep.mubr.f32.mxu0 0.0
    %579 = vmatmul.mubr.f32.gmra.mrb[0].mxu0 %v425
    %v580 = vpop.f32.mrb[0].mxu0
    %v581 = vadd.f32 %v319, %v580
    %v582 = vpop.f32.mrb[0].mxu0
    %583 = vmatprep.mubr.f32.mxu0 0.0
    %584 = vmatmul.mubr.f32.gmra.mrb[0].mxu0 %v428
    %v585 = vpop.f32.mrb[0].mxu0
    %v586 = vadd.f32 %v324, %v585
    %v587 = vpop.f32.mrb[0].mxu0
    %588 = vmatprep.mubr.f32.mxu0 0.0
    %589 = vmatmul.mubr.f32.gmra.mrb[0].mxu0 %v431
    %v590 = vpop.f32.mrb[0].mxu0
    %v591 = vadd.f32 %v329, %v590
    %v592 = vpop.f32.mrb[0].mxu0
    %593 = vmatprep.mubr.f32.mxu0 0.0
    %594 = vmatmul.mubr.f32.gmra.mrb[0].mxu0 %v434
    %v595 = vpop.f32.mrb[0].mxu0
    %v596 = vadd.f32 %v334, %v595
    %v597 = vpop.f32.mrb[0].mxu0
    %598 = vmatprep.mubr.f32.mxu0 0.0
    %599 = vmatmul.mubr.f32.gmra.mrb[0].mxu0 %v437
    %v600 = vpop.f32.mrb[0].mxu0
    %v601 = vadd.f32 %v339, %v600
    %v602 = vpop.f32.mrb[0].mxu0
    %603 = vmatprep.mubr.f32.mxu0 0.0
    %604 = vmatmul.mubr.f32.gmra.mrb[0].mxu0 %v440
    %v605 = vpop.f32.mrb[0].mxu0
    %v606 = vadd.f32 %v344, %v605
    %v607 = vpop.f32.mrb[0].mxu0
    %608 = vmatprep.mubr.f32.mxu0 0.0
    %609 = vmatmul.mubr.f32.gmra.mrb[0].mxu0 %v443
    %v610 = vpop.f32.mrb[0].mxu0
    %v611 = vadd.f32 %v349, %v610
    %v612 = vpop.f32.mrb[0].mxu0
    %613 = vmatprep.mubr.f32.mxu0 0.0
    %614 = vmatmul.mubr.f32.gmra.mrb[0].mxu0 %v446
    %v615 = vpop.f32.mrb[0].mxu0
    %v616 = vadd.f32 %v354, %v615
    %v617 = vpop.f32.mrb[0].mxu0
    %618 = vmatprep.mubr.f32.mxu0 0.0
    %619 = vmatmul.mubr.f32.gmra.mrb[0].mxu0 %v449
    %v620 = vpop.f32.mrb[0].mxu0
    %v621 = vadd.f32 %v359, %v620
    %v622 = vpop.f32.mrb[0].mxu0
    %623 = vmatprep.mubr.f32.mxu0 0.0
    %624 = vmatmul.mubr.f32.gmra.mrb[0].mxu0 %v452
    %v625 = vpop.f32.mrb[0].mxu0
    %v626 = vadd.f32 %v364, %v625
    %v627 = vpop.f32.mrb[0].mxu0
    %628 = vmatprep.mubr.f32.mxu0 0.0
    %629 = vmatmul.mubr.f32.gmra.mrb[0].mxu0 %v455
    %v630 = vpop.f32.mrb[0].mxu0
    %v631 = vadd.f32 %v369, %v630
    %v632 = vpop.f32.mrb[0].mxu0
    %633 = vmatprep.mubr.f32.mxu0 0.0
    %634 = vmatmul.mubr.f32.gmra.mrb[0].mxu0 %v458
    %v635 = vpop.f32.mrb[0].mxu0
    %v636 = vadd.f32 %v374, %v635
    %v637 = vpop.f32.mrb[0].mxu0
    %638 = vmatprep.mubr.f32.mxu0 0.0
    %639 = vmatmul.mubr.f32.gmra.mrb[0].mxu0 %v461
    %v640 = vpop.f32.mrb[0].mxu0
    %v641 = vadd.f32 %v379, %v640
    %v642 = vpop.f32.mrb[0].mxu0
    %643 = vmatprep.mubr.f32.mxu0 0.0
    %644 = vmatmul.mubr.f32.gmra.mrb[0].mxu0 %v464
    %v645 = vpop.f32.mrb[0].mxu0
    %v646 = vadd.f32 %v384, %v645
    %v647 = vpop.f32.mrb[0].mxu0
    %648 = vmatprep.mubr.f32.mxu0 0.0
    %649 = vmatmul.mubr.f32.gmra.mrb[0].mxu0 %v467
    %v650 = vpop.f32.mrb[0].mxu0
    %v651 = vadd.f32 %v389, %v650
    %v652 = vpop.f32.mrb[0].mxu0
    %653 = vmatprep.mubr.f32.mxu0 0.0
    %654 = vmatmul.mubr.f32.gmra.mrb[0].mxu0 %v470
    %v655 = vpop.f32.mrb[0].mxu0
    %v656 = vadd.f32 %v394, %v655
    %v657 = vpop.f32.mrb[0].mxu0
    %658 = vmatprep.mubr.f32.mxu0 0.0
    %659 = vmatmul.mubr.f32.gmra.mrb[0].mxu0 %v473
    %v660 = vpop.f32.mrb[0].mxu0
    %v661 = vadd.f32 %v399, %v660
    %v662 = vpop.f32.mrb[0].mxu0
    %663 = vdwg.mxu0
    %v664 = vld [vmem:[#allocation8] sm:$0xff]
    %v665 = vld [vmem:[#allocation8 + $0x8] sm:$0xff]
    %v666 = vld [vmem:[#allocation8 + $0x10] sm:$0xff]
    %v667 = vld [vmem:[#allocation8 + $0x18] sm:$0xff]
    %672 = vrot.lane.b32.xlu0 %v546, 1
    %v673 = vpop.permute.xlu0 %672
    %674 = vrot.lane.b32.xlu0 %v551, 1
    %v675 = vpop.permute.xlu0 %674
    %676 = vrot.lane.b32.xlu0 %v556, 1
    %v677 = vpop.permute.xlu0 %676
    %678 = vrot.lane.b32.xlu0 %v561, 1
    %v679 = vpop.permute.xlu0 %678
    %vm684 = vcmask 7168
    %v685 = vsel %vm684, %v546, %v673
    %v686 = vsel %vm684, %v551, %v675
    %v687 = vsel %vm684, %v556, %v677
    %v688 = vsel %vm684, %v561, %v679
    %690 = vset.pattern.permute.xlu0 0
    %691 = vperm.xlu0 %690, %v664
    %v692 = vpop.permute.xlu0 %691
    %695 = vset.pattern.permute.xlu0 0
    %696 = vperm.xlu0 %695, %v665
    %v697 = vpop.permute.xlu0 %696
    %700 = vset.pattern.permute.xlu0 0
    %701 = vperm.xlu0 %700, %v666
    %v702 = vpop.permute.xlu0 %701
    %705 = vset.pattern.permute.xlu0 0
    %706 = vperm.xlu0 %705, %v667
    %v707 = vpop.permute.xlu0 %706
    %v709 = vadd.f32 %v692, %v685
    %v710 = vadd.f32 %v697, %v686
    %v711 = vadd.f32 %v702, %v687
    %v712 = vadd.f32 %v707, %v688
    %v713 = vadd.f32 %v709, %v566
    %v714 = vadd.f32 %v710, %v571
    %v715 = vadd.f32 %v711, %v576
    %v716 = vadd.f32 %v712, %v581
    %721 = vrot.lane.b32.xlu0 %v586, 127
    %v722 = vpop.permute.xlu0 %721
    %723 = vrot.lane.b32.xlu0 %v591, 127
    %v724 = vpop.permute.xlu0 %723
    %725 = vrot.lane.b32.xlu0 %v596, 127
    %v726 = vpop.permute.xlu0 %725
    %727 = vrot.lane.b32.xlu0 %v601, 127
    %v728 = vpop.permute.xlu0 %727
    %vm733 = vcmask 121856
    %v734 = vsel %vm733, %v722, %v586
    %v735 = vsel %vm733, %v724, %v591
    %v736 = vsel %vm733, %v726, %v596
    %v737 = vsel %vm733, %v728, %v601
    %v738 = vadd.f32 %v713, %v734
    %v739 = vadd.f32 %v714, %v735
    %v740 = vadd.f32 %v715, %v736
    %v741 = vadd.f32 %v716, %v737
    %v742 = vxor.u32 %v738, 2147483648
    %v743 = vxor.u32 %v739, 2147483648
    %v744 = vxor.u32 %v740, 2147483648
    %v745 = vxor.u32 %v741, 2147483648
    %v746 = vmul.f32 %v742, 1.442695
    %v747 = vpow.pop %v746
    %v748 = vmul.f32 %v743, 1.442695
    %v749 = vpow.pop %v748
    %v750 = vmul.f32 %v744, 1.442695
    %v751 = vpow.pop %v750
    %v752 = vmul.f32 %v745, 1.442695
    %v753 = vpow.pop %v752
    %v754 = vadd.f32 %v747, 1.0
    %v755 = vadd.f32 %v749, 1.0
    %v756 = vadd.f32 %v751, 1.0
    %v757 = vadd.f32 %v753, 1.0
    %v758 = vrcp.pop %v754
    %v759 = vmul.f32 1.0, %v758
    %v760 = vrcp.pop %v755
    %v761 = vmul.f32 1.0, %v760
    %v762 = vrcp.pop %v756
    %v763 = vmul.f32 1.0, %v762
    %v764 = vrcp.pop %v757
    %v765 = vmul.f32 1.0, %v764
    %v766 = vld [vmem:[#allocation7] sm:$0xff]
    %v767 = vld [vmem:[#allocation7 + $0x8] sm:$0xff]
    %v768 = vld [vmem:[#allocation7 + $0x10] sm:$0xff]
    %v769 = vld [vmem:[#allocation7 + $0x18] sm:$0xff]
    %v770 = vld [vmem:[#allocation7 + $0x20] sm:$0xff]
    %v771 = vld [vmem:[#allocation7 + $0x28] sm:$0xff]
    %v772 = vld [vmem:[#allocation7 + $0x30] sm:$0xff]
    %v773 = vld [vmem:[#allocation7 + $0x38] sm:$0xff]
    %v774 = vld [vmem:[#allocation7 + $0x40] sm:$0xff]
    %v775 = vld [vmem:[#allocation7 + $0x48] sm:$0xff]
    %v776 = vld [vmem:[#allocation7 + $0x50] sm:$0xff]
    %v777 = vld [vmem:[#allocation7 + $0x58] sm:$0xff]
    %v779 = vsel %vm144, %v766, 0
    %v782 = vsel %vm144, %v767, 0
    %v785 = vsel %vm144, %v768, 0
    %v788 = vsel %vm144, %v769, 0
    %v791 = vsel %vm144, %v770, 0
    %v794 = vsel %vm144, %v771, 0
    %v797 = vsel %vm144, %v772, 0
    %v800 = vsel %vm144, %v773, 0
    %v803 = vsel %vm144, %v774, 0
    %v806 = vsel %vm144, %v775, 0
    %v809 = vsel %vm144, %v776, 0
    %v812 = vsel %vm144, %v777, 0
    %814 = vmatprep.subr.mxu0 0.0
    %815 = vmatpush1.msra.mxu0 %v759
    %816 = vmatprep.subr.mxu0 0.0
    %817 = vmatpush1.msra.mxu0 %v761
    %818 = vmatprep.subr.mxu0 0.0
    %819 = vmatpush1.msra.mxu0 %v763
    %820 = vmatprep.subr.mxu0 0.0
    %821 = vmatpush1.msra.mxu0 %v765
    %822 = vmatprep.subr.mxu0 0.0
    %823 = vmatpush1.msra.mxu0 0.0
    %824 = vmatprep.subr.mxu0 0.0
    %825 = vmatpush1.msra.mxu0 0.0
    %826 = vmatprep.subr.mxu0 0.0
    %827 = vmatpush1.msra.mxu0 0.0
    %828 = vmatprep.subr.mxu0 0.0
    %829 = vmatpush1.msra.mxu0 0.0
    %830 = vmatprep.subr.mxu0 0.0
    %831 = vmatpush1.msra.mxu0 0.0
    %832 = vmatprep.subr.mxu0 0.0
    %833 = vmatpush1.msra.mxu0 0.0
    %834 = vmatprep.subr.mxu0 0.0
    %835 = vmatpush1.msra.mxu0 0.0
    %836 = vmatprep.subr.mxu0 0.0
    %837 = vmatpush1.msra.mxu0 0.0
    %838 = vmatprep.subr.mxu0 0.0
    %839 = vmatpush1.msra.mxu0 0.0
    %840 = vmatprep.subr.mxu0 0.0
    %841 = vmatpush1.msra.mxu0 0.0
    %842 = vmatprep.subr.mxu0 0.0
    %843 = vmatpush1.msra.mxu0 0.0
    %844 = vmatprep.subr.mxu0 0.0
    %845 = vmatpush1.msra.mxu0 0.0
    %846 = vmatprep.subr.mxu0 0.0
    %847 = vmatpush1.msra.mxu0 0.0
    %848 = vmatprep.subr.mxu0 0.0
    %849 = vmatpush1.msra.mxu0 0.0
    %850 = vmatprep.subr.mxu0 0.0
    %851 = vmatpush1.msra.mxu0 0.0
    %852 = vmatprep.subr.mxu0 0.0
    %853 = vmatpush1.msra.mxu0 0.0
    %854 = vmatprep.subr.mxu0 0.0
    %855 = vmatpush1.msra.mxu0 0.0
    %856 = vmatprep.subr.mxu0 0.0
    %857 = vmatpush1.msra.mxu0 0.0
    %858 = vmatprep.subr.mxu0 0.0
    %859 = vmatpush1.msra.mxu0 0.0
    %860 = vmatprep.subr.mxu0 0.0
    %861 = vmatpush1.msra.mxu0 0.0
    %862 = vmatprep.subr.mxu0 0.0
    %863 = vmatpush1.msra.mxu0 0.0
    %864 = vmatprep.subr.mxu0 0.0
    %865 = vmatpush1.msra.mxu0 0.0
    %866 = vmatprep.subr.mxu0 0.0
    %867 = vmatpush1.msra.mxu0 0.0
    %868 = vmatprep.subr.mxu0 0.0
    %869 = vmatpush1.msra.mxu0 0.0
    %870 = vmatprep.subr.mxu0 0.0
    %871 = vmatpush1.msra.mxu0 0.0
    %872 = vmatprep.subr.mxu0 0.0
    %873 = vmatpush1.msra.mxu0 0.0
    %874 = vmatprep.subr.mxu0 0.0
    %875 = vmatpush1.msra.mxu0 0.0
    %876 = vmatprep.subr.mxu0 0.0
    %877 = vmatpush1.msra.mxu0 0.0
    %878 = vmatprep.mubr.f32.mxu0 0.0
    %879 = vmatmul.mubr.f32.gmra.mrb[0].mxu0 %v779
    %v880 = vpop.f32.mrb[0].mxu0
    %v881 = vadd.f32 0.0, %v880
    %v882 = vpop.f32.mrb[0].mxu0
    %883 = vmatprep.mubr.f32.mxu0 0.0
    %884 = vmatmul.mubr.f32.gmra.mrb[0].mxu0 %v782
    %v885 = vpop.f32.mrb[0].mxu0
    %v886 = vadd.f32 0.0, %v885
    %v887 = vpop.f32.mrb[0].mxu0
    %888 = vmatprep.mubr.f32.mxu0 0.0
    %889 = vmatmul.mubr.f32.gmra.mrb[0].mxu0 %v785
    %v890 = vpop.f32.mrb[0].mxu0
    %v891 = vadd.f32 0.0, %v890
    %v892 = vpop.f32.mrb[0].mxu0
    %893 = vmatprep.mubr.f32.mxu0 0.0
    %894 = vmatmul.mubr.f32.gmra.mrb[0].mxu0 %v788
    %v895 = vpop.f32.mrb[0].mxu0
    %v896 = vadd.f32 0.0, %v895
    %v897 = vpop.f32.mrb[0].mxu0
    %898 = vmatprep.mubr.f32.mxu0 0.0
    %899 = vmatmul.mubr.f32.gmra.mrb[0].mxu0 %v791
    %v900 = vpop.f32.mrb[0].mxu0
    %v901 = vadd.f32 0.0, %v900
    %v902 = vpop.f32.mrb[0].mxu0
    %903 = vmatprep.mubr.f32.mxu0 0.0
    %904 = vmatmul.mubr.f32.gmra.mrb[0].mxu0 %v794
    %v905 = vpop.f32.mrb[0].mxu0
    %v906 = vadd.f32 0.0, %v905
    %v907 = vpop.f32.mrb[0].mxu0
    %908 = vmatprep.mubr.f32.mxu0 0.0
    %909 = vmatmul.mubr.f32.gmra.mrb[0].mxu0 %v797
    %v910 = vpop.f32.mrb[0].mxu0
    %v911 = vadd.f32 0.0, %v910
    %v912 = vpop.f32.mrb[0].mxu0
    %913 = vmatprep.mubr.f32.mxu0 0.0
    %914 = vmatmul.mubr.f32.gmra.mrb[0].mxu0 %v800
    %v915 = vpop.f32.mrb[0].mxu0
    %v916 = vadd.f32 0.0, %v915
    %v917 = vpop.f32.mrb[0].mxu0
    %918 = vmatprep.mubr.f32.mxu0 0.0
    %919 = vmatmul.mubr.f32.gmra.mrb[0].mxu0 %v803
    %v920 = vpop.f32.mrb[0].mxu0
    %v921 = vadd.f32 0.0, %v920
    %v922 = vpop.f32.mrb[0].mxu0
    %923 = vmatprep.mubr.f32.mxu0 0.0
    %924 = vmatmul.mubr.f32.gmra.mrb[0].mxu0 %v806
    %v925 = vpop.f32.mrb[0].mxu0
    %v926 = vadd.f32 0.0, %v925
    %v927 = vpop.f32.mrb[0].mxu0
    %928 = vmatprep.mubr.f32.mxu0 0.0
    %929 = vmatmul.mubr.f32.gmra.mrb[0].mxu0 %v809
    %v930 = vpop.f32.mrb[0].mxu0
    %v931 = vadd.f32 0.0, %v930
    %v932 = vpop.f32.mrb[0].mxu0
    %933 = vmatprep.mubr.f32.mxu0 0.0
    %934 = vmatmul.mubr.f32.gmra.mrb[0].mxu0 %v812
    %v935 = vpop.f32.mrb[0].mxu0
    %v936 = vadd.f32 0.0, %v935
    %v937 = vpop.f32.mrb[0].mxu0
    %938 = vdwg.mxu0
    %v939 = vadd.f32 %v606, %v881
    %v940 = vadd.f32 %v611, %v886
    %v941 = vadd.f32 %v616, %v891
    %v942 = vadd.f32 %v621, %v896
    %v943 = vadd.f32 %v626, %v901
    %v944 = vadd.f32 %v631, %v906
    %v945 = vadd.f32 %v636, %v911
    %v946 = vadd.f32 %v641, %v916
    %v947 = vadd.f32 %v646, %v921
    %v948 = vadd.f32 %v651, %v926
    %v949 = vadd.f32 %v656, %v931
    %v950 = vadd.f32 %v661, %v936
    %v951 = vld [vmem:[#allocation8 + $0x20] sm:$0xff]
    %v952 = vld [vmem:[#allocation8 + $0x28] sm:$0xff]
    %v953 = vld [vmem:[#allocation8 + $0x30] sm:$0xff]
    %v954 = vld [vmem:[#allocation8 + $0x38] sm:$0xff]
    %v955 = vld [vmem:[#allocation8 + $0x40] sm:$0xff]
    %v956 = vld [vmem:[#allocation8 + $0x48] sm:$0xff]
    %v957 = vld [vmem:[#allocation8 + $0x50] sm:$0xff]
    %v958 = vld [vmem:[#allocation8 + $0x58] sm:$0xff]
    %v959 = vld [vmem:[#allocation8 + $0x60] sm:$0xff]
    %v960 = vld [vmem:[#allocation8 + $0x68] sm:$0xff]
    %v961 = vld [vmem:[#allocation8 + $0x70] sm:$0xff]
    %v962 = vld [vmem:[#allocation8 + $0x78] sm:$0xff]
    %964 = vset.pattern.permute.xlu0 0
    %965 = vperm.xlu0 %964, %v951
    %v966 = vpop.permute.xlu0 %965
    %969 = vset.pattern.permute.xlu0 0
    %970 = vperm.xlu0 %969, %v952
    %v971 = vpop.permute.xlu0 %970
    %974 = vset.pattern.permute.xlu0 0
    %975 = vperm.xlu0 %974, %v953
    %v976 = vpop.permute.xlu0 %975
    %979 = vset.pattern.permute.xlu0 0
    %980 = vperm.xlu0 %979, %v954
    %v981 = vpop.permute.xlu0 %980
    %984 = vset.pattern.permute.xlu0 0
    %985 = vperm.xlu0 %984, %v955
    %v986 = vpop.permute.xlu0 %985
    %989 = vset.pattern.permute.xlu0 0
    %990 = vperm.xlu0 %989, %v956
    %v991 = vpop.permute.xlu0 %990
    %994 = vset.pattern.permute.xlu0 0
    %995 = vperm.xlu0 %994, %v957
    %v996 = vpop.permute.xlu0 %995
    %999 = vset.pattern.permute.xlu0 0
    %1000 = vperm.xlu0 %999, %v958
    %v1001 = vpop.permute.xlu0 %1000
    %1004 = vset.pattern.permute.xlu0 0
    %1005 = vperm.xlu0 %1004, %v959
    %v1006 = vpop.permute.xlu0 %1005
    %1009 = vset.pattern.permute.xlu0 0
    %1010 = vperm.xlu0 %1009, %v960
    %v1011 = vpop.permute.xlu0 %1010
    %1014 = vset.pattern.permute.xlu0 0
    %1015 = vperm.xlu0 %1014, %v961
    %v1016 = vpop.permute.xlu0 %1015
    %1019 = vset.pattern.permute.xlu0 0
    %1020 = vperm.xlu0 %1019, %v962
    %v1021 = vpop.permute.xlu0 %1020
    %v1023 = vadd.f32 %v939, %v966
    %v1024 = vadd.f32 %v940, %v971
    %v1025 = vadd.f32 %v941, %v976
    %v1026 = vadd.f32 %v942, %v981
    %v1027 = vadd.f32 %v943, %v986
    %v1028 = vadd.f32 %v944, %v991
    %v1029 = vadd.f32 %v945, %v996
    %v1030 = vadd.f32 %v946, %v1001
    %v1031 = vadd.f32 %v947, %v1006
    %v1032 = vadd.f32 %v948, %v1011
    %v1033 = vadd.f32 %v949, %v1016
    %v1034 = vadd.f32 %v950, %v1021
    %v1035 = vxor.u32 %v1023, 2147483648
    %v1036 = vxor.u32 %v1024, 2147483648
    %v1037 = vxor.u32 %v1025, 2147483648
    %v1038 = vxor.u32 %v1026, 2147483648
    %v1039 = vxor.u32 %v1027, 2147483648
    %v1040 = vxor.u32 %v1028, 2147483648
    %v1041 = vxor.u32 %v1029, 2147483648
    %v1042 = vxor.u32 %v1030, 2147483648
    %v1043 = vxor.u32 %v1031, 2147483648
    %v1044 = vxor.u32 %v1032, 2147483648
    %v1045 = vxor.u32 %v1033, 2147483648
    %v1046 = vxor.u32 %v1034, 2147483648
    %v1047 = vmul.f32 %v1035, 1.442695
    %v1048 = vpow.pop %v1047
    %v1049 = vmul.f32 %v1036, 1.442695
    %v1050 = vpow.pop %v1049
    %v1051 = vmul.f32 %v1037, 1.442695
    %v1052 = vpow.pop %v1051
    %v1053 = vmul.f32 %v1038, 1.442695
    %v1054 = vpow.pop %v1053
    %v1055 = vmul.f32 %v1039, 1.442695
    %v1056 = vpow.pop %v1055
    %v1057 = vmul.f32 %v1040, 1.442695
    %v1058 = vpow.pop %v1057
    %v1059 = vmul.f32 %v1041, 1.442695
    %v1060 = vpow.pop %v1059
    %v1061 = vmul.f32 %v1042, 1.442695
    %v1062 = vpow.pop %v1061
    %v1063 = vmul.f32 %v1043, 1.442695
    %v1064 = vpow.pop %v1063
    %v1065 = vmul.f32 %v1044, 1.442695
    %v1066 = vpow.pop %v1065
    %v1067 = vmul.f32 %v1045, 1.442695
    %v1068 = vpow.pop %v1067
    %v1069 = vmul.f32 %v1046, 1.442695
    %v1070 = vpow.pop %v1069
    %v1071 = vadd.f32 %v1048, 1.0
    %v1072 = vadd.f32 %v1050, 1.0
    %v1073 = vadd.f32 %v1052, 1.0
    %v1074 = vadd.f32 %v1054, 1.0
    %v1075 = vadd.f32 %v1056, 1.0
    %v1076 = vadd.f32 %v1058, 1.0
    %v1077 = vadd.f32 %v1060, 1.0
    %v1078 = vadd.f32 %v1062, 1.0
    %v1079 = vadd.f32 %v1064, 1.0
    %v1080 = vadd.f32 %v1066, 1.0
    %v1081 = vadd.f32 %v1068, 1.0
    %v1082 = vadd.f32 %v1070, 1.0
    %v1083 = vrcp.pop %v1071
    %v1084 = vmul.f32 1.0, %v1083
    %v1085 = vrcp.pop %v1072
    %v1086 = vmul.f32 1.0, %v1085
    %v1087 = vrcp.pop %v1073
    %v1088 = vmul.f32 1.0, %v1087
    %v1089 = vrcp.pop %v1074
    %v1090 = vmul.f32 1.0, %v1089
    %v1091 = vrcp.pop %v1075
    %v1092 = vmul.f32 1.0, %v1091
    %v1093 = vrcp.pop %v1076
    %v1094 = vmul.f32 1.0, %v1093
    %v1095 = vrcp.pop %v1077
    %v1096 = vmul.f32 1.0, %v1095
    %v1097 = vrcp.pop %v1078
    %v1098 = vmul.f32 1.0, %v1097
    %v1099 = vrcp.pop %v1079
    %v1100 = vmul.f32 1.0, %v1099
    %v1101 = vrcp.pop %v1080
    %v1102 = vmul.f32 1.0, %v1101
    %v1103 = vrcp.pop %v1081
    %v1104 = vmul.f32 1.0, %v1103
    %v1105 = vrcp.pop %v1082
    %v1106 = vmul.f32 1.0, %v1105
    %v1107 = vadd.f32 %v1084, %v1092
    %v1108 = vadd.f32 %v1086, %v1094
    %v1109 = vadd.f32 %v1088, %v1096
    %v1110 = vadd.f32 %v1090, %v1098
    %v1111 = vadd.f32 %v1107, %v1100
    %v1112 = vadd.f32 %v1108, %v1102
    %v1113 = vadd.f32 %v1109, %v1104
    %v1114 = vadd.f32 %v1110, %v1106
    %vm1115 = vcmask 130048
    %1116 = vst.msk [vmem:[%s6] sm:$0xff] %vm1115, %v1092
    %1117 = vst.msk [vmem:[%s6 + $0x8] sm:$0xff] %vm1115, %v1094
    %1118 = vst.msk [vmem:[%s6 + $0x10] sm:$0xff] %vm1115, %v1096
    %1119 = vst.msk [vmem:[%s6 + $0x18] sm:$0xff] %vm1115, %v1098
    %1120 = vst.msk [vmem:[%s6 + $0x20] sm:$0xff] %vm1115, %v1111
    %1121 = vst.msk [vmem:[%s6 + $0x28] sm:$0xff] %vm1115, %v1112
    %1122 = vst.msk [vmem:[%s6 + $0x30] sm:$0xff] %vm1115, %v1113
    %1123 = vst.msk [vmem:[%s6 + $0x38] sm:$0xff] %vm1115, %v1114
    %1124 = vst.msk [vmem:[#allocation2] sm:$0xff] %vm1115, %v1111
    %1125 = vst.msk [vmem:[#allocation2 + $0x8] sm:$0xff] %vm1115, %v1112
    %1126 = vst.msk [vmem:[#allocation2 + $0x10] sm:$0xff] %vm1115, %v1113
    %1127 = vst.msk [vmem:[#allocation2 + $0x18] sm:$0xff] %vm1115, %v1114
    // Predicated region
    $region46: #{conv1d_pass_cell_2_v1.1} parent=1 // pred_check
      _
    $region47: #{conv1d_pass_cell_2_v1.1} parent=1 // pred_check_branch
      %1129 = sbr.rel (0) target = $region49
    $region48: #{conv1d_pass_cell_2_v1.1} parent=1 // pred_region
      _
    $region49: #{conv1d_pass_cell_2_v1.1} parent=1 // pred_fallthru
      _
    // Predicated region
    $region50: #{conv1d_pass_cell_2_v1.1} parent=1 // pred_check
      _
    $region51: #{conv1d_pass_cell_2_v1.1} parent=1 // pred_check_branch
      %1131 = sbr.rel (0) target = $region53
    $region52: #{conv1d_pass_cell_2_v1.1} parent=1 // pred_region
      _
    $region53: #{conv1d_pass_cell_2_v1.1} parent=1 // pred_fallthru
      _
    %1132 = vsyncpa [#allocation4], 1
    %1133 = vsyncpa [#allocation6], 1
    %1134 = vsyncpa [#allocation9], 1

</llo_original>
